<compile_context>
chip_gen: v5e
topology: v5e:2x2
jax: 0.10.0
libtpu: 0.0.40
codegen_flags: <defaults>
</compile_context>

<pallas_src>
import jax
import jax.numpy as jnp
from jax.experimental import pallas as pl
from jax.experimental.pallas import tpu as pltpu

_LANE = 128
_TARGET_TILE_BYTES = 4 << 20   # ~4 MiB per array per grid step
_VMEM_LIMIT_BYTES = 32 << 20   # 3 arrays x 2 buffers x 4 MiB = 24 MiB + slack


def _sublane(dtype) -> int:
    """Sublane packing: f32 -> 8, bf16/f16 -> 16, int8/fp8 -> 32."""
    return max(8, 32 // jnp.dtype(dtype).itemsize)


def _wa_kernel(tau_ref, cur_ref, past_ref, out_ref):
    """out = tau*past + (1-tau)*cur, computed in f32 (output is f32)."""
    tau = tau_ref[0]
    cur = cur_ref[...].astype(jnp.float32)
    past = past_ref[...].astype(jnp.float32)
    out_ref[...] = (tau * past + (1.0 - tau) * cur).astype(out_ref.dtype)


def _weighted_avg_2d(tau_arr, cur2d, past2d, *, tile_rows):
    rows, cols = cur2d.shape
    grid = (pl.cdiv(rows, tile_rows),)
    return pl.pallas_call(
        _wa_kernel,
        out_shape=jax.ShapeDtypeStruct((rows, cols), jnp.float32),
        grid=grid,
        in_specs=[
            pl.BlockSpec(memory_space=pltpu.MemorySpace.SMEM),   # tau scalar
            pl.BlockSpec((tile_rows, cols), lambda i: (i, 0)),   # current
            pl.BlockSpec((tile_rows, cols), lambda i: (i, 0)),   # past
        ],
        out_specs=pl.BlockSpec((tile_rows, cols), lambda i: (i, 0)),
        compiler_params=pltpu.CompilerParams(
            dimension_semantics=("parallel",),
            vmem_limit_bytes=_VMEM_LIMIT_BYTES,
        ),
    )(tau_arr, cur2d, past2d)


def _as_2d(x):
    """Free (layout-compatible) 2-D view; lane-dense [rows,128] when possible."""
    total = x.size
    if total % _LANE == 0:
        return x.reshape(total // _LANE, _LANE)
    if x.ndim >= 2:
        return x.reshape(-1, x.shape[-1])
    return x.reshape(1, max(total, 1))


def _update_one(tau_arr, cur, past):
    out_shape = cur.shape
    cur2d = _as_2d(cur)
    past2d = _as_2d(past)
    rows, cols = cur2d.shape

    sub = max(_sublane(cur.dtype), _sublane(past.dtype))  # f32 out needs 8
    bytes_per_row = cols * 4                               # sized for f32
    max_rows = max(sub, (_TARGET_TILE_BYTES // max(bytes_per_row, 1)) // sub * sub)

    if rows <= max_rows:
        tile_rows = rows            # full-extent block: always a legal shape
    else:
        tile_rows = max_rows        # sublane-aligned; cdiv grid masks the tail

    out2d = _weighted_avg_2d(tau_arr, cur2d, past2d, tile_rows=tile_rows)
    return out2d.reshape(out_shape)


class SemanticUpdateWA:
    """JAX/Pallas port of the PyTorch SemanticUpdateWA module."""

    def __init__(self, n_channels: int, tau: float = 0.2):
        # n_channels is unused in the reference forward as well.
        self.tau = float(tau)
        self._forward = jax.jit(self._forward_impl)

    def reset_parameters(self):
        pass

    def _forward_impl(self, tau_arr, current_in_dict, past_in_dict):
        out_dict = {}
        for node_type, current_in in current_in_dict.items():
            out_dict[node_type] = {}
            for r_type, cur_emb in current_in.items():
                past_emb = past_in_dict[node_type][r_type]
                out_dict[node_type][r_type] = _update_one(tau_arr, cur_emb, past_emb)
        return out_dict

    def __call__(self, current_in_dict, past_in_dict):
        cur = jax.tree_util.tree_map(jnp.asarray, current_in_dict)
        past = jax.tree_util.tree_map(jnp.asarray, past_in_dict)
        tau_arr = jnp.asarray([self.tau], dtype=jnp.float32)
        return self._forward(tau_arr, cur, past)


if __name__ == "__main__":
    key = jax.random.PRNGKey(0)

    # Small nested-dict inputs: 2 node types x 2 relation types,
    # embeddings of shape [num_nodes=8, hidden=32].
    num_nodes, hidden = 8, 32
    node_types = ["author", "paper"]
    rel_types = ["writes", "cites"]
    tau = 0.2

    current_in_dict = {}
    past_in_dict = {}
    for nt in node_types:
        current_in_dict[nt] = {}
        past_in_dict[nt] = {}
        for rt in rel_types:
            key, k1, k2 = jax.random.split(key, 3)
            current_in_dict[nt][rt] = jax.random.normal(
                k1, (num_nodes, hidden), dtype=jnp.float32)
            past_in_dict[nt][rt] = jax.random.normal(
                k2, (num_nodes, hidden), dtype=jnp.float32)

    module = SemanticUpdateWA(n_channels=hidden, tau=tau)
    out_dict = module(current_in_dict, past_in_dict)

    # Block and verify against a pure-JAX reference.
    ok = True
    for nt in node_types:
        for rt in rel_types:
            out = jax.block_until_ready(out_dict[nt][rt])
            ref = (tau * past_in_dict[nt][rt]
                   + (1.0 - tau) * current_in_dict[nt][rt])
            if out.shape != ref.shape or not jnp.allclose(
                    out, ref, atol=1e-5, rtol=1e-5):
                ok = False

    if ok:
        print("KERNEL_OK")
</pallas_src>

<mosaic_0001>
module attributes {stable_mosaic.version = 11 : i64} {
  func.func @_wa_kernel(%arg0: i32, %arg1: memref<1xf32, #tpu.memory_space<smem>>, %arg2: memref<2x128xf32, #tpu.memory_space<vmem>>, %arg3: memref<2x128xf32, #tpu.memory_space<vmem>>, %arg4: memref<2x128xf32, #tpu.memory_space<vmem>>) attributes {dimension_semantics = [#tpu.dimension_semantics<parallel>], iteration_bounds = array<i64: 1>, scalar_prefetch = 0 : i64, scratch_operands = 0 : i64, tpu.core_type = #tpu.core_type<tc>, window_params = [{transform_indices = @transform_0, window_bounds = array<i64: 1>}, {transform_indices = @transform_1, window_bounds = array<i64: 2, 128>}, {transform_indices = @transform_2, window_bounds = array<i64: 2, 128>}, {transform_indices = @transform_3, window_bounds = array<i64: 2, 128>}]} {
    %c0 = arith.constant 0 : index
    %0 = memref.load %arg1[%c0] : memref<1xf32, #tpu.memory_space<smem>>
    %c0_0 = arith.constant 0 : index
    %c0_1 = arith.constant 0 : index
    %1 = vector.load %arg2[%c0_0, %c0_1] : memref<2x128xf32, #tpu.memory_space<vmem>>, vector<2x128xf32>
    %c0_2 = arith.constant 0 : index
    %c0_3 = arith.constant 0 : index
    %2 = vector.load %arg3[%c0_2, %c0_3] : memref<2x128xf32, #tpu.memory_space<vmem>>, vector<2x128xf32>
    %3 = vector.broadcast %0 : f32 to vector<2x128xf32>
    %4 = arith.mulf %3, %2 : vector<2x128xf32>
    %cst = arith.constant 1.000000e+00 : f32
    %5 = arith.subf %cst, %0 : f32
    %6 = vector.broadcast %5 : f32 to vector<2x128xf32>
    %7 = arith.mulf %6, %1 : vector<2x128xf32>
    %8 = arith.addf %4, %7 : vector<2x128xf32>
    %c0_4 = arith.constant 0 : index
    %c0_5 = arith.constant 0 : index
    %9 = vector.load %arg4[%c0_4, %c0_5] : memref<2x128xf32, #tpu.memory_space<vmem>>, vector<2x128xf32>
    tpu.vector_store %arg4[%c0_4, %c0_5], %8 {strides = array<i32>} : memref<2x128xf32, #tpu.memory_space<vmem>>, vector<2x128xf32>,
    return
  }
  func.func @transform_0(%arg0: i32) -> i32 {
    %c0_i32 = arith.constant 0 : i32
    %c0_i32_0 = arith.constant 0 : i32
    return %c0_i32 : i32
  }
  func.func @transform_1(%arg0: i32) -> (i32, i32) {
    %c0_i32 = arith.constant 0 : i32
    %c0_i32_0 = arith.constant 0 : i32
    return %arg0, %c0_i32 : i32, i32
  }
  func.func @transform_2(%arg0: i32) -> (i32, i32) {
    %c0_i32 = arith.constant 0 : i32
    %c0_i32_0 = arith.constant 0 : i32
    return %arg0, %c0_i32 : i32, i32
  }
  func.func @transform_3(%arg0: i32) -> (i32, i32) {
    %c0_i32 = arith.constant 0 : i32
    %c0_i32_0 = arith.constant 0 : i32
    return %arg0, %c0_i32 : i32, i32
  }
}

</mosaic_0001>

<llo_original>
// kernel: _forward_impl.4
$region0: #{_forward_impl.4}
  #allocation0 [shape = 'u32[]', space=smem, size = 0x4, offset = 0x4, fixed_abs, tag = 'smem constant byte address 0x4 - core index']
  #allocation1 [shape = 'u32[72,128]{1,0:T(1,128)}', space=vmem, size = 0x9000, scoped, tag = 'internal scratch']
  #allocation2 [shape = 'f32[1]{0:T(128)S(6)}', space=smem, size = 0x200, scoped, tag = 'scoped memory for _forward_impl.4']
  %s0 = inlined_call_operand.<no memory space> [shape: f32[1], index: 0, kind: input, shape index: {}]
  %s1 = inlined_call_operand.vmem [shape: f32[2,128], index: 1, kind: input, shape index: {}]
  %s2 = inlined_call_operand.vmem [shape: f32[2,128], index: 2, kind: input, shape index: {}]
  %s3 = inlined_call_operand.vmem [shape: f32[2,128], index: 3, kind: output, shape index: {}]
  %s4 = sld [smem:[#allocation0]]
  $region22: #{_forward_impl.4} parent=0
    _
  %s6 = ssub.s32 1, %s4
  %s7 = scalar_select 0, %s6, %s4
  %8 = sst [smem:[#allocation2]] %s0
  // Predicated region
  $region2: #{_forward_impl.4} parent=0 // pred_check
    _
  $region3: #{_forward_impl.4} parent=0 // pred_check_branch
    %10 = sbr.rel (0) target = $region5
  $region4: #{_forward_impl.4} parent=0 // pred_region
    _
  $region5: #{_forward_impl.4} parent=0 // pred_fallthru
    _
  // Predicated region
  $region6: #{_forward_impl.4} parent=0 // pred_check
    _
  $region7: #{_forward_impl.4} parent=0 // pred_check_branch
    %12 = sbr.rel (0) target = $region9
  $region8: #{_forward_impl.4} parent=0 // pred_region
    _
  $region9: #{_forward_impl.4} parent=0 // pred_fallthru
    _
  // Predicated region
  $region10: #{_forward_impl.4} parent=0 // pred_check
    _
  $region11: #{_forward_impl.4} parent=0 // pred_check_branch
    %14 = sbr.rel (0) target = $region13
  $region12: #{_forward_impl.4} parent=0 // pred_region
    _
  $region13: #{_forward_impl.4} parent=0 // pred_fallthru
    _
  %s15 = sld [smem:[#allocation2]]
  %v16 = vld [vmem:[%s1] sm:$0x3]
  %v17 = vld [vmem:[%s2] sm:$0x3]
  %v18 = vstv %s15
  %v19 = vmul.f32 %v18, %v17
  %s20 = ssub.f32 1.0, %s15
  %v21 = vstv %s20
  %v22 = vmul.f32 %v21, %v16
  %v23 = vadd.f32 %v19, %v22
  %24 = vst [vmem:[%s3] sm:$0x3] %v23
  // Predicated region
  $region14: #{_forward_impl.4} parent=0 // pred_check
    _
  $region15: #{_forward_impl.4} parent=0 // pred_check_branch
    %26 = sbr.rel (0) target = $region17
  $region16: #{_forward_impl.4} parent=0 // pred_region
    _
  $region17: #{_forward_impl.4} parent=0 // pred_fallthru
    _
  // Predicated region
  $region18: #{_forward_impl.4} parent=0 // pred_check
    _
  $region19: #{_forward_impl.4} parent=0 // pred_check_branch
    %28 = sbr.rel (0) target = $region21
  $region20: #{_forward_impl.4} parent=0 // pred_region
    _
  $region21: #{_forward_impl.4} parent=0 // pred_fallthru
    _

</llo_original>
